<compile_context>
chip_gen: v7x
topology: tpu7x:2x2x1
jax: 0.10.0
libtpu: 0.0.40
codegen_flags: <defaults>
</compile_context>

<pallas_src>
import functools
from typing import Dict, List, Union

import jax
import jax.numpy as jnp
from jax.experimental import pallas as pl
from jax.experimental.pallas import tpu as pltpu


# ----------------------------------------------------------------------------
# Lane-dense fused elementwise Pallas machinery
# ----------------------------------------------------------------------------
_MIN_PALLAS_ELEMS = 512 * 1024          # below this the jnp/XLA fused path wins
_LANE_CHOICES = (1024, 512, 256, 128)   # all multiples of 128 -> unmasked vst


def _round_up(x: int, m: int) -> int:
    return ((x + m - 1) // m) * m


@functools.lru_cache(maxsize=1)
def _chip_tuning():
    """(max_block_elems, vmem_limit_bytes) chosen from the attached TPU generation."""
    kind = ""
    try:
        kind = jax.devices()[0].device_kind.lower()
    except Exception:
        pass
    if "v6" in kind or "v7" in kind:
        # v6e (~1.4 TB/s) / v7x (~3.2 TB/s): per-step overhead matters -> 4 MiB f32
        # blocks.  3 arrays x 2 buffers x 4 MiB = 24 MiB; raise the scoped-VMEM limit.
        return 1024 * 1024, 26 * 1024 * 1024
    # v5e (and anything unknown/older): 2 MiB blocks; 3 x 2 x 2 MiB = 12 MiB fits the
    # 16 MiB scoped-VMEM default, so leave the limit alone.
    return 512 * 1024, None


def _sublane_multiple(*dtypes) -> int:
    """Native sublane multiple for the narrowest dtype (8 f32 / 16 bf16 / 32 int8)."""
    min_bytes = min(jnp.dtype(d).itemsize for d in dtypes)
    return 8 * max(1, 4 // max(1, min_bytes))


def _lane_dense_elementwise(fn, *cols: jnp.ndarray, out_dtype=None,
                            flops_per_elem: int = 3) -> jnp.ndarray:
    """Apply an elementwise `fn` (computed in f32) to one or more (N, 1) columns.

    Columns are flattened and reshaped (metadata-only) to a lane-dense
    (rows, lanes) slab; the Pallas kernel runs full-width VPU work with unmasked
    stores.  Returns an (N, 1) column in `out_dtype`.
    """
    n = cols[0].shape[0]
    out_dtype = jnp.dtype(out_dtype if out_dtype is not None else cols[0].dtype)
    flats = [c.reshape(-1) for c in cols]            # (N,1)->(N,): metadata only

    if n < _MIN_PALLAS_ELEMS:
        # Small-N fallback: custom-call overhead > HBM time; XLA fuses this into
        # the producers with zero extra HBM passes.
        res = fn(*[f.astype(jnp.float32) for f in flats]).astype(out_dtype)
        return res.reshape(n, 1)
    # TODO(synk): when u_t/u_xx are not already materialized in HBM, the jnp path can
    # still be preferable; that is not detectable from here.

    # Pick the widest lane count that divides N so the common case needs NO padding
    # (jnp.pad would add a full extra HBM read+write per input).
    lanes = next((l for l in _LANE_CHOICES if n % l == 0), _LANE_CHOICES[-1])
    padded_n = _round_up(n, lanes)
    if padded_n != n:
        # Uncommon: tail pad of < 128 elements (one copy; unavoidable here).
        flats = [jnp.pad(f, (0, padded_n - n)) for f in flats]
    rows = padded_n // lanes
    mats = [f.reshape(rows, lanes) for f in flats]   # metadata-only reshape

    max_block_elems, vmem_limit = _chip_tuning()
    sub = _sublane_multiple(out_dtype, *[m.dtype for m in mats])
    max_row_tile = max(sub, max_block_elems // lanes)
    # Aim for >= 4 grid steps: restores double-buffered pipelining and keeps both
    # v7x TensorCores busy via dimension_semantics=("parallel",).
    row_tile = max(sub, min(max_row_tile, _round_up(pl.cdiv(rows, 4), sub)))
    grid = pl.cdiv(rows, row_tile)    # ragged last block is masked by Pallas

    def kernel(*refs):
        in_refs, o_ref = refs[:-1], refs[-1]
        vals = [r[...].astype(jnp.float32) for r in in_refs]  # f32: free VPU slack
        o_ref[...] = fn(*vals).astype(o_ref.dtype)

    elems = rows * lanes
    cost = pl.CostEstimate(
        flops=flops_per_elem * elems,
        transcendentals=0,
        bytes_accessed=elems * (sum(m.dtype.itemsize for m in mats)
                                + out_dtype.itemsize),
    )
    cp_kwargs = dict(
        dimension_semantics=("parallel",),
        # Let the elementwise tails of the input producers fuse into the operands,
        # removing an HBM round-trip per input on this purely HBM-bound kernel.
        allow_input_fusion=[True] * len(mats),
    )
    if vmem_limit is not None:
        cp_kwargs["vmem_limit_bytes"] = vmem_limit

    out = pl.pallas_call(
        kernel,
        out_shape=jax.ShapeDtypeStruct((rows, lanes), out_dtype),
        grid=(grid,),
        in_specs=[pl.BlockSpec((row_tile, lanes), lambda i: (i, 0)) for _ in mats],
        out_specs=pl.BlockSpec((row_tile, lanes), lambda i: (i, 0)),
        compiler_params=pltpu.CompilerParams(**cp_kwargs),
        cost_estimate=cost,
    )(*mats)

    flat = out.reshape(-1)
    if padded_n != n:
        flat = flat[:n]
    return flat.reshape(n, 1)


def fused_residual_sq(u_t: jnp.ndarray, u_xx: jnp.ndarray, alpha: float) -> jnp.ndarray:
    """Fused point-wise loss: (u_t - alpha * u_xx) ** 2, one pass over HBM (f32 out)."""
    def _res_sq(a, b):
        r = a - alpha * b       # CSE'd: single subtraction, then square
        return r * r
    return _lane_dense_elementwise(_res_sq, u_t, u_xx,
                                   out_dtype=jnp.float32, flops_per_elem=3)


def pointwise_sq(x: jnp.ndarray) -> jnp.ndarray:
    """Generic point-wise squared residual (lane-dense, f32 output)."""
    return _lane_dense_elementwise(lambda a: a * a, x,
                                   out_dtype=jnp.float32, flops_per_elem=1)


# ----------------------------------------------------------------------------
# JAX port of the _PINN base class
# ----------------------------------------------------------------------------
class _PINN:
    """JAX/Pallas port of the PyTorch `_PINN` base class (no parameters)."""

    def forward(self, data_dict: Dict[str, jnp.ndarray]) -> Dict[str, jnp.ndarray]:
        raise NotImplementedError

    # n-order derivative.  Torch: autograd.grad(outputs, inputs, ones, create_graph)
    # applied n_order times.  JAX equivalent: VJP-with-ones == grad of the summed
    # output, nested n_order times (valid because each output row depends only on
    # its own input row, as required by the PINN contract).
    # TODO(synk): autodiff is a program transformation, not a Pallas kernel; kept in JAX.
    def grad(self, fn, inputs: jnp.ndarray, n_order: int = 1) -> jnp.ndarray:
        g = fn
        for _ in range(n_order):
            prev = g
            g = jax.grad(lambda z, p=prev: jnp.sum(p(z)))
        return g(inputs)

    def split_columns(self, X: jnp.ndarray) -> Union[jnp.ndarray, List[jnp.ndarray]]:
        num_columns = X.shape[1]
        if num_columns == 1:
            return X
        elif num_columns > 1:
            return [X[:, i: i + 1] for i in range(num_columns)]
        else:
            raise ValueError("X must have at least one column")

    def cat_columns(self, X: List[jnp.ndarray]) -> jnp.ndarray:
        # XLA concat is strictly faster than a narrow-lane Pallas concat here.
        num_columns = len(X)
        if num_columns == 1:
            return X[0]
        elif num_columns > 1:
            return jnp.concatenate(X, axis=1)
        else:
            raise ValueError("X must contain at least one column tensor")

    def split_X_columns_and_require_grad(self, X: jnp.ndarray):
        # requires_grad_ has no JAX equivalent (tracing decides differentiability);
        # semantics otherwise identical to split_columns.
        return self.split_columns(X)


class DemoHeatPINN(_PINN):
    """Minimal concrete subclass: 1-D heat equation residual u_t - alpha * u_xx."""

    ALPHA = 0.1

    @staticmethod
    def _u(x: jnp.ndarray, t: jnp.ndarray) -> jnp.ndarray:
        # Closed-form smooth surrogate solution (deterministic, no checkpoint).
        return jnp.sin(jnp.pi * x) * jnp.exp(-t)

    def forward(self, data_dict: Dict[str, jnp.ndarray]) -> Dict[str, jnp.ndarray]:
        X_res = data_dict["X_res"]                          # (N, 2): columns x, t
        x, t = self.split_X_columns_and_require_grad(X_res)

        u_t = self.grad(lambda t_: self._u(x, t_), t, n_order=1)   # (N, 1)
        u_xx = self.grad(lambda x_: self._u(x_, t), x, n_order=2)  # (N, 1)

        # Fused Pallas kernel: (u_t - alpha * u_xx) ** 2 in a single HBM pass.
        pw_loss_res = fused_residual_sq(u_t, u_xx, self.ALPHA)     # (N, 1) f32

        X_cat = self.cat_columns([x, t])                    # (N, 2), bit-identical to X_res
        return {"pw_loss_res": pw_loss_res, "X_cat": X_cat}


# ----------------------------------------------------------------------------
# Demo / correctness check
# ----------------------------------------------------------------------------
if __name__ == "__main__":
    key = jax.random.PRNGKey(0)

    def run_and_check(N: int):
        kx, kt = jax.random.split(jax.random.fold_in(key, N))
        x = jax.random.uniform(kx, (N, 1), jnp.float32, minval=-1.0, maxval=1.0)
        t = jax.random.uniform(kt, (N, 1), jnp.float32, minval=0.0, maxval=1.0)
        X_res = jnp.concatenate([x, t], axis=1)             # (N, 2)

        model = DemoHeatPINN()
        loss_dict = jax.block_until_ready(model.forward({"X_res": X_res}))

        # Reference (analytic derivatives of the demo u):
        # u = sin(pi x) exp(-t); u_t = -u; u_xx = -pi^2 u; residual = (-1 + alpha*pi^2) u
        u = jnp.sin(jnp.pi * x) * jnp.exp(-t)
        residual_ref = (-1.0 + DemoHeatPINN.ALPHA * jnp.pi ** 2) * u
        pw_ref = residual_ref ** 2

        assert loss_dict["pw_loss_res"].shape == (N, 1)
        assert loss_dict["X_cat"].shape == (N, 2)
        assert jnp.allclose(loss_dict["pw_loss_res"], pw_ref, atol=1e-4, rtol=1e-4)
        assert jnp.allclose(loss_dict["X_cat"], X_res)

    # Pallas path, lane-aligned N (no padding, no extra copies): 512K points.
    run_and_check(1 << 19)
    # Pallas path, ragged N (tail-pad + edge-block masking path).
    run_and_check((1 << 19) + 300)
    # Small-N jnp fallback path (demo-sized inputs).
    run_and_check(256)

    print("KERNEL_OK")
</pallas_src>

<mosaic_0001>
module attributes {stable_mosaic.version = 11 : i64} {
  func.func @kernel(%arg0: i32, %arg1: memref<128x1024xf32, #tpu.memory_space<vmem>>, %arg2: memref<128x1024xf32, #tpu.memory_space<vmem>>, %arg3: memref<128x1024xf32, #tpu.memory_space<vmem>>) attributes {dimension_semantics = [#tpu.dimension_semantics<parallel>], iteration_bounds = array<i64: 4>, scalar_prefetch = 0 : i64, scratch_operands = 0 : i64, tpu.core_type = #tpu.core_type<tc>, window_params = [{transform_indices = @transform_0, window_bounds = array<i64: 128, 1024>}, {transform_indices = @transform_1, window_bounds = array<i64: 128, 1024>}, {transform_indices = @transform_2, window_bounds = array<i64: 128, 1024>}]} {
    %c0 = arith.constant 0 : index
    %c0_0 = arith.constant 0 : index
    %0 = vector.load %arg1[%c0, %c0_0] : memref<128x1024xf32, #tpu.memory_space<vmem>>, vector<128x1024xf32>
    %c0_1 = arith.constant 0 : index
    %c0_2 = arith.constant 0 : index
    %1 = vector.load %arg2[%c0_1, %c0_2] : memref<128x1024xf32, #tpu.memory_space<vmem>>, vector<128x1024xf32>
    %cst = arith.constant 1.000000e-01 : f32
    %2 = vector.broadcast %cst : f32 to vector<128x1024xf32>
    %3 = arith.mulf %2, %1 : vector<128x1024xf32>
    %4 = arith.subf %0, %3 : vector<128x1024xf32>
    %5 = arith.mulf %4, %4 : vector<128x1024xf32>
    %c0_3 = arith.constant 0 : index
    %c0_4 = arith.constant 0 : index
    %6 = vector.load %arg3[%c0_3, %c0_4] : memref<128x1024xf32, #tpu.memory_space<vmem>>, vector<128x1024xf32>
    tpu.vector_store %arg3[%c0_3, %c0_4], %5 {strides = array<i32>} : memref<128x1024xf32, #tpu.memory_space<vmem>>, vector<128x1024xf32>,
    return
  }
  func.func @transform_0(%arg0: i32) -> (i32, i32) {
    %c0_i32 = arith.constant 0 : i32
    %c0_i32_0 = arith.constant 0 : i32
    return %arg0, %c0_i32 : i32, i32
  }
  func.func @transform_1(%arg0: i32) -> (i32, i32) {
    %c0_i32 = arith.constant 0 : i32
    %c0_i32_0 = arith.constant 0 : i32
    return %arg0, %c0_i32 : i32, i32
  }
  func.func @transform_2(%arg0: i32) -> (i32, i32) {
    %c0_i32 = arith.constant 0 : i32
    %c0_i32_0 = arith.constant 0 : i32
    return %arg0, %c0_i32 : i32, i32
  }
}

</mosaic_0001>

<llo_original>
// kernel: tpu_custom_call.1
$region0: #{tpu_custom_call.1}
  #allocation0 [shape = 'u32[]', space=smem, size = 0x4, offset = 0x4, fixed_abs, tag = 'smem constant byte address 0x4 - core index']
  #allocation1 [shape = 'u32[144,128]{1,0:T(1,128)}', space=vmem, size = 0x12000, scoped, tag = 'internal scratch']
  %s0 = inlined_call_operand.hbm [shape: f32[512,1024], index: 0, kind: input, shape index: {}]
  %s1 = inlined_call_operand.hbm [shape: f32[512,1024], index: 1, kind: input, shape index: {}]
  %s2 = inlined_call_operand.hbm [shape: f32[512,1024], index: 2, kind: output, shape index: {}]
  %s3 = sld [smem:[#allocation0]]
  $region49: #{tpu_custom_call.1} parent=0
    _
  %s5 = ssub.s32 1, %s3
  %s6 = scalar_select 0, %s5, %s3
  $region1: #{tpu_custom_call.1} parent=0
    #allocation2 [shape = 'u8[1048576]{0}', space=vmem, size = 0x100000, scoped, tag = 'input window, operand 0']
    #allocation3 [shape = 's32[2]{0}', space=sflag, size = 0x8, scoped, tag = 'scoped memory for tpu_custom_call.1']
    #allocation4 [shape = 's32[2]{0}', space=sflag, size = 0x8, scoped, tag = 'scoped memory for tpu_custom_call.1']
    #allocation5 [shape = 'u8[1048576]{0}', space=vmem, size = 0x100000, scoped, tag = 'input window, operand 1']
    #allocation6 [shape = 's32[2]{0}', space=sflag, size = 0x8, scoped, tag = 'scoped memory for tpu_custom_call.1']
    #allocation7 [shape = 'u8[1048576]{0}', space=vmem, size = 0x100000, scoped, tag = 'output window, operand 0']
    %7 = vsyncpa [#allocation3], 0
    %s8 = scalar_lea.sflag [#allocation3], 1
    %9 = vsyncpa %s8, 0
    %10 = vsyncpa [#allocation6], 0
    %s11 = scalar_lea.sflag [#allocation6], 1
    %12 = vsyncpa %s11, 0
    %13 = vsyncpa [#allocation4], 0
    %s14 = scalar_lea.sflag [#allocation4], 1
    %15 = vsyncpa %s14, 0
    loop: start=0, step=1, limit=6
    $region2: #{tpu_custom_call.1} parent=1 // loop_pre_header
      _
    $region3: #{tpu_custom_call.1} parent=1 // loop_header
      %s17 = sphi 0, %s21
      %p18 = scmp.ge.s32.totalorder %s17, 6
      %s27 = sphi 0, %s29
      %s30 = sphi 0, %s27
      %s31 = sphi 0, %s30
      %s47 = sphi 0, %s31
      %s53 = sphi 0, %s55
      %s56 = sphi 0, %s53
      %s57 = sphi 0, %s56
      %s73 = sphi 0, %s57
      %s79 = sphi 0, %s81
      %s82 = sphi 0, %s79
      %s83 = sphi 0, %s82
      %s99 = sphi 0, %s83
    $region4: #{tpu_custom_call.1} parent=1 // loop_header_branch
      %20 = sbr.rel (%p18) target = $region8
    $region5: #{tpu_custom_call.1} parent=1 // loop_body
      %s22 = ssub.s32 %s17, 1
      %s23 = ssub.s32 %s17, 2
      %s24 = sadd.s32 %s17, 1
      %s25 = ssub.s32 %s17, %s24
      %p26 = scmp.eq.s32.totalorder %s25, 0
      %s28 = sadd.s32 %s27, 1
      %s29 = scalar_select %p26, %s27, %s28
      %p32 = pneg %p26
      %p33 = scmp.eq.s32.totalorder %s17, 3
      %p34 = por %p32, %p33
      %p35 = scmp.ne.s32.totalorder %s27, %s30
      %p36 = scmp.eq.s32.totalorder %s17, 0
      %p37 = por %p35, %p36
      %p38 = scmp.ne.s32.totalorder %s27, %s30
      %p39 = scmp.eq.s32.totalorder %s22, 3
      %p40 = por %p38, %p39
      %p41 = scmp.ne.s32.totalorder %s30, %s31
      %p42 = scmp.eq.s32.totalorder %s22, 0
      %p43 = por %p41, %p42
      %p44 = scmp.ne.s32.totalorder %s30, %s31
      %p45 = scmp.eq.s32.totalorder %s23, 3
      %p46 = por %p44, %p45
      %p48 = scmp.ne.s32.totalorder %s31, %s47
      %p49 = scmp.eq.s32.totalorder %s23, 0
      %p50 = por %p48, %p49
      %s51 = ssub.s32 %s17, %s24
      %p52 = scmp.eq.s32.totalorder %s51, 0
      %s54 = sadd.s32 %s53, 1
      %s55 = scalar_select %p52, %s53, %s54
      %p58 = pneg %p52
      %p59 = scmp.eq.s32.totalorder %s17, 3
      %p60 = por %p58, %p59
      %p61 = scmp.ne.s32.totalorder %s53, %s56
      %p62 = scmp.eq.s32.totalorder %s17, 0
      %p63 = por %p61, %p62
      %p64 = scmp.ne.s32.totalorder %s53, %s56
      %p65 = scmp.eq.s32.totalorder %s22, 3
      %p66 = por %p64, %p65
      %p67 = scmp.ne.s32.totalorder %s56, %s57
      %p68 = scmp.eq.s32.totalorder %s22, 0
      %p69 = por %p67, %p68
      %p70 = scmp.ne.s32.totalorder %s56, %s57
      %p71 = scmp.eq.s32.totalorder %s23, 3
      %p72 = por %p70, %p71
      %p74 = scmp.ne.s32.totalorder %s57, %s73
      %p75 = scmp.eq.s32.totalorder %s23, 0
      %p76 = por %p74, %p75
      %s77 = ssub.s32 %s17, %s24
      %p78 = scmp.eq.s32.totalorder %s77, 0
      %s80 = sadd.s32 %s79, 1
      %s81 = scalar_select %p78, %s79, %s80
      %p84 = pneg %p78
      %p85 = scmp.eq.s32.totalorder %s17, 3
      %p86 = por %p84, %p85
      %p87 = scmp.ne.s32.totalorder %s79, %s82
      %p88 = scmp.eq.s32.totalorder %s17, 0
      %p89 = por %p87, %p88
      %p90 = scmp.ne.s32.totalorder %s79, %s82
      %p91 = scmp.eq.s32.totalorder %s22, 3
      %p92 = por %p90, %p91
      %p93 = scmp.ne.s32.totalorder %s82, %s83
      %p94 = scmp.eq.s32.totalorder %s22, 0
      %p95 = por %p93, %p94
      %p96 = scmp.ne.s32.totalorder %s82, %s83
      %p97 = scmp.eq.s32.totalorder %s23, 3
      %p98 = por %p96, %p97
      %p100 = scmp.ne.s32.totalorder %s83, %s99
      %p101 = scmp.eq.s32.totalorder %s23, 0
      %p102 = por %p100, %p101
      %p103 = scmp.le.s32.totalorder 1, %s17
      %p104 = scmp.lt.s32.totalorder %s17, 5
      %p105 = pnand %p103, %p104
      %p106 = pneg %p105
      // Predicated region
      $region9: #{tpu_custom_call.1} parent=5 // pred_check
        _
      $region10: #{tpu_custom_call.1} parent=5 // pred_check_branch
        %108 = sbr.rel (%p105) target = $region12
      $region11: #{tpu_custom_call.1} parent=5 // pred_region
        %s109 = ssub.s32 %s17, 1
      $region12: #{tpu_custom_call.1} parent=5 // pred_fallthru
        _
      %p110 = scmp.lt.s32.totalorder %s17, 4
      // Predicated region
      $region13: #{tpu_custom_call.1} parent=5 // pred_check
        %p111 = pneg %p110
      $region14: #{tpu_custom_call.1} parent=5 // pred_check_branch
        %113 = sbr.rel (%p111) target = $region16
      $region15: #{tpu_custom_call.1} parent=5 // pred_region
        // Predicated region
        $region17: #{tpu_custom_call.1} parent=15 // pred_check
          %p114 = pneg %p37
        $region18: #{tpu_custom_call.1} parent=15 // pred_check_branch
          %116 = sbr.rel (%p114) target = $region20
        $region19: #{tpu_custom_call.1} parent=15 // pred_region
          %s117 = sand.u32 %s27, 1
          %s118 = scalar_lea.sflag [#allocation3], %s117
          %s119 = sand.u32 %s27, 1
          %s120 = smul.addr %s119, 1024
          %s121 = scalar_lea.vmem [#allocation2], %s120
          %s122 = smul.u32 16, %s17
          %s124 = ssub.s32 16384, 16384
          %125 = vsyncadd %s118, %s124
          %s126 = smul.addr %s122, 8
          %s127 = smul.addr %s126, 128
          %s128 = scalar_lea.hbm %s0, %s127
          %s129 = sshll.u32 %s121, 4
          %s130 = int_to_ptr.vmem [resolvable:$true] %s129
          %135 = dma.hbm_to_vmem [thread:$0]  %s128, 16384, %s130, %s118, 1024, 1024, 64
        $region20: #{tpu_custom_call.1} parent=15 // pred_fallthru
          _
        // Predicated region
        $region21: #{tpu_custom_call.1} parent=15 // pred_check
          %p136 = pneg %p63
        $region22: #{tpu_custom_call.1} parent=15 // pred_check_branch
          %138 = sbr.rel (%p136) target = $region24
        $region23: #{tpu_custom_call.1} parent=15 // pred_region
          %s139 = sand.u32 %s53, 1
          %s140 = scalar_lea.sflag [#allocation6], %s139
          %s141 = sand.u32 %s53, 1
          %s142 = smul.addr %s141, 1024
          %s143 = scalar_lea.vmem [#allocation5], %s142
          %s144 = smul.u32 16, %s17
          %s146 = ssub.s32 16384, 16384
          %147 = vsyncadd %s140, %s146
          %s148 = smul.addr %s144, 8
          %s149 = smul.addr %s148, 128
          %s150 = scalar_lea.hbm %s1, %s149
          %s151 = sshll.u32 %s143, 4
          %s152 = int_to_ptr.vmem [resolvable:$true] %s151
          %157 = dma.hbm_to_vmem [thread:$0]  %s150, 16384, %s152, %s140, 1024, 1024, 64
        $region24: #{tpu_custom_call.1} parent=15 // pred_fallthru
          _
      $region16: #{tpu_custom_call.1} parent=5 // pred_fallthru
        _
      %p158 = scmp.le.s32.totalorder 1, %s17
      %p159 = scmp.lt.s32.totalorder %s17, 5
      %p160 = pnand %p158, %p159
      %p161 = pneg %p160
      // Predicated region
      $region25: #{tpu_custom_call.1} parent=5 // pred_check
        _
      $region26: #{tpu_custom_call.1} parent=5 // pred_check_branch
        %163 = sbr.rel (%p160) target = $region28
      $region27: #{tpu_custom_call.1} parent=5 // pred_region
        %s164 = ssub.s32 %s17, 1
        %s165 = sand.u32 %s30, 1
        %s166 = scalar_lea.sflag [#allocation3], %s165
        %s167 = sand.u32 %s30, 1
        %s168 = smul.addr %s167, 1024
        %s169 = scalar_lea.vmem [#allocation2], %s168
        // Predicated region
        $region29: #{tpu_custom_call.1} parent=27 // pred_check
          %p170 = pneg %p43
        $region30: #{tpu_custom_call.1} parent=27 // pred_check_branch
          %172 = sbr.rel (%p170) target = $region32
        $region31: #{tpu_custom_call.1} parent=27 // pred_region
          %173 = dma.done %s166, 16384
        $region32: #{tpu_custom_call.1} parent=27 // pred_fallthru
          _
        %s174 = sand.u32 %s56, 1
        %s175 = scalar_lea.sflag [#allocation6], %s174
        %s176 = sand.u32 %s56, 1
        %s177 = smul.addr %s176, 1024
        %s178 = scalar_lea.vmem [#allocation5], %s177
        // Predicated region
        $region33: #{tpu_custom_call.1} parent=27 // pred_check
          %p179 = pneg %p69
        $region34: #{tpu_custom_call.1} parent=27 // pred_check_branch
          %181 = sbr.rel (%p179) target = $region36
        $region35: #{tpu_custom_call.1} parent=27 // pred_region
          %182 = dma.done %s175, 16384
        $region36: #{tpu_custom_call.1} parent=27 // pred_fallthru
          _
        %s183 = sand.u32 %s30, 1
        %s184 = scalar_lea.sflag [#allocation3], %s183
        %s185 = sand.u32 %s30, 1
        %s186 = smul.addr %s185, 1024
        %s187 = scalar_lea.vmem [#allocation2], %s186
        %p188 = pneg %p43
        %p189 = pneg %p40
        %s190 = sand.u32 %s56, 1
        %s191 = scalar_lea.sflag [#allocation6], %s190
        %s192 = sand.u32 %s56, 1
        %s193 = smul.addr %s192, 1024
        %s194 = scalar_lea.vmem [#allocation5], %s193
        %p195 = pneg %p69
        %p196 = pneg %p66
        %p197 = pneg %p95
        %p198 = pneg %p92
        %s199 = sand.u32 %s82, 1
        %s200 = scalar_lea.sflag [#allocation4], %s199
        %s201 = sand.u32 %s82, 1
        %s202 = smul.addr %s201, 1024
        %s203 = scalar_lea.vmem [#allocation7], %s202
        %s204 = smul.u32 16, %s22
        %s205 = smul.u32 16, %s22
        %s206 = smul.u32 16, %s22
        %v207 = vld [vmem:[%s169] sm:$0xff]
        %v208 = vld [vmem:[%s169 + $0x8] sm:$0xff]
        %v209 = vld [vmem:[%s169 + $0x10] sm:$0xff]
        %v210 = vld [vmem:[%s169 + $0x18] sm:$0xff]
        %v211 = vld [vmem:[%s169 + $0x20] sm:$0xff]
        %v212 = vld [vmem:[%s169 + $0x28] sm:$0xff]
        %v213 = vld [vmem:[%s169 + $0x30] sm:$0xff]
        %v214 = vld [vmem:[%s169 + $0x38] sm:$0xff]
        %v215 = vld [vmem:[%s169 + $0x40] sm:$0xff]
        %v216 = vld [vmem:[%s169 + $0x48] sm:$0xff]
        %v217 = vld [vmem:[%s169 + $0x50] sm:$0xff]
        %v218 = vld [vmem:[%s169 + $0x58] sm:$0xff]
        %v219 = vld [vmem:[%s169 + $0x60] sm:$0xff]
        %v220 = vld [vmem:[%s169 + $0x68] sm:$0xff]
        %v221 = vld [vmem:[%s169 + $0x70] sm:$0xff]
        %v222 = vld [vmem:[%s169 + $0x78] sm:$0xff]
        %v223 = vld [vmem:[%s169 + $0x80] sm:$0xff]
        %v224 = vld [vmem:[%s169 + $0x88] sm:$0xff]
        %v225 = vld [vmem:[%s169 + $0x90] sm:$0xff]
        %v226 = vld [vmem:[%s169 + $0x98] sm:$0xff]
        %v227 = vld [vmem:[%s169 + $0xa0] sm:$0xff]
        %v228 = vld [vmem:[%s169 + $0xa8] sm:$0xff]
        %v229 = vld [vmem:[%s169 + $0xb0] sm:$0xff]
        %v230 = vld [vmem:[%s169 + $0xb8] sm:$0xff]
        %v231 = vld [vmem:[%s169 + $0xc0] sm:$0xff]
        %v232 = vld [vmem:[%s169 + $0xc8] sm:$0xff]
        %v233 = vld [vmem:[%s169 + $0xd0] sm:$0xff]
        %v234 = vld [vmem:[%s169 + $0xd8] sm:$0xff]
        %v235 = vld [vmem:[%s169 + $0xe0] sm:$0xff]
        %v236 = vld [vmem:[%s169 + $0xe8] sm:$0xff]
        %v237 = vld [vmem:[%s169 + $0xf0] sm:$0xff]
        %v238 = vld [vmem:[%s169 + $0xf8] sm:$0xff]
        %v239 = vld [vmem:[%s169 + $0x100] sm:$0xff]
        %v240 = vld [vmem:[%s169 + $0x108] sm:$0xff]
        %v241 = vld [vmem:[%s169 + $0x110] sm:$0xff]
        %v242 = vld [vmem:[%s169 + $0x118] sm:$0xff]
        %v243 = vld [vmem:[%s169 + $0x120] sm:$0xff]
        %v244 = vld [vmem:[%s169 + $0x128] sm:$0xff]
        %v245 = vld [vmem:[%s169 + $0x130] sm:$0xff]
        %v246 = vld [vmem:[%s169 + $0x138] sm:$0xff]
        %v247 = vld [vmem:[%s169 + $0x140] sm:$0xff]
        %v248 = vld [vmem:[%s169 + $0x148] sm:$0xff]
        %v249 = vld [vmem:[%s169 + $0x150] sm:$0xff]
        %v250 = vld [vmem:[%s169 + $0x158] sm:$0xff]
        %v251 = vld [vmem:[%s169 + $0x160] sm:$0xff]
        %v252 = vld [vmem:[%s169 + $0x168] sm:$0xff]
        %v253 = vld [vmem:[%s169 + $0x170] sm:$0xff]
        %v254 = vld [vmem:[%s169 + $0x178] sm:$0xff]
        %v255 = vld [vmem:[%s169 + $0x180] sm:$0xff]
        %v256 = vld [vmem:[%s169 + $0x188] sm:$0xff]
        %v257 = vld [vmem:[%s169 + $0x190] sm:$0xff]
        %v258 = vld [vmem:[%s169 + $0x198] sm:$0xff]
        %v259 = vld [vmem:[%s169 + $0x1a0] sm:$0xff]
        %v260 = vld [vmem:[%s169 + $0x1a8] sm:$0xff]
        %v261 = vld [vmem:[%s169 + $0x1b0] sm:$0xff]
        %v262 = vld [vmem:[%s169 + $0x1b8] sm:$0xff]
        %v263 = vld [vmem:[%s169 + $0x1c0] sm:$0xff]
        %v264 = vld [vmem:[%s169 + $0x1c8] sm:$0xff]
        %v265 = vld [vmem:[%s169 + $0x1d0] sm:$0xff]
        %v266 = vld [vmem:[%s169 + $0x1d8] sm:$0xff]
        %v267 = vld [vmem:[%s169 + $0x1e0] sm:$0xff]
        %v268 = vld [vmem:[%s169 + $0x1e8] sm:$0xff]
        %v269 = vld [vmem:[%s169 + $0x1f0] sm:$0xff]
        %v270 = vld [vmem:[%s169 + $0x1f8] sm:$0xff]
        %v271 = vld [vmem:[%s169 + $0x200] sm:$0xff]
        %v272 = vld [vmem:[%s169 + $0x208] sm:$0xff]
        %v273 = vld [vmem:[%s169 + $0x210] sm:$0xff]
        %v274 = vld [vmem:[%s169 + $0x218] sm:$0xff]
        %v275 = vld [vmem:[%s169 + $0x220] sm:$0xff]
        %v276 = vld [vmem:[%s169 + $0x228] sm:$0xff]
        %v277 = vld [vmem:[%s169 + $0x230] sm:$0xff]
        %v278 = vld [vmem:[%s169 + $0x238] sm:$0xff]
        %v279 = vld [vmem:[%s169 + $0x240] sm:$0xff]
        %v280 = vld [vmem:[%s169 + $0x248] sm:$0xff]
        %v281 = vld [vmem:[%s169 + $0x250] sm:$0xff]
        %v282 = vld [vmem:[%s169 + $0x258] sm:$0xff]
        %v283 = vld [vmem:[%s169 + $0x260] sm:$0xff]
        %v284 = vld [vmem:[%s169 + $0x268] sm:$0xff]
        %v285 = vld [vmem:[%s169 + $0x270] sm:$0xff]
        %v286 = vld [vmem:[%s169 + $0x278] sm:$0xff]
        %v287 = vld [vmem:[%s169 + $0x280] sm:$0xff]
        %v288 = vld [vmem:[%s169 + $0x288] sm:$0xff]
        %v289 = vld [vmem:[%s169 + $0x290] sm:$0xff]
        %v290 = vld [vmem:[%s169 + $0x298] sm:$0xff]
        %v291 = vld [vmem:[%s169 + $0x2a0] sm:$0xff]
        %v292 = vld [vmem:[%s169 + $0x2a8] sm:$0xff]
        %v293 = vld [vmem:[%s169 + $0x2b0] sm:$0xff]
        %v294 = vld [vmem:[%s169 + $0x2b8] sm:$0xff]
        %v295 = vld [vmem:[%s169 + $0x2c0] sm:$0xff]
        %v296 = vld [vmem:[%s169 + $0x2c8] sm:$0xff]
        %v297 = vld [vmem:[%s169 + $0x2d0] sm:$0xff]
        %v298 = vld [vmem:[%s169 + $0x2d8] sm:$0xff]
        %v299 = vld [vmem:[%s169 + $0x2e0] sm:$0xff]
        %v300 = vld [vmem:[%s169 + $0x2e8] sm:$0xff]
        %v301 = vld [vmem:[%s169 + $0x2f0] sm:$0xff]
        %v302 = vld [vmem:[%s169 + $0x2f8] sm:$0xff]
        %v303 = vld [vmem:[%s169 + $0x300] sm:$0xff]
        %v304 = vld [vmem:[%s169 + $0x308] sm:$0xff]
        %v305 = vld [vmem:[%s169 + $0x310] sm:$0xff]
        %v306 = vld [vmem:[%s169 + $0x318] sm:$0xff]
        %v307 = vld [vmem:[%s169 + $0x320] sm:$0xff]
        %v308 = vld [vmem:[%s169 + $0x328] sm:$0xff]
        %v309 = vld [vmem:[%s169 + $0x330] sm:$0xff]
        %v310 = vld [vmem:[%s169 + $0x338] sm:$0xff]
        %v311 = vld [vmem:[%s169 + $0x340] sm:$0xff]
        %v312 = vld [vmem:[%s169 + $0x348] sm:$0xff]
        %v313 = vld [vmem:[%s169 + $0x350] sm:$0xff]
        %v314 = vld [vmem:[%s169 + $0x358] sm:$0xff]
        %v315 = vld [vmem:[%s169 + $0x360] sm:$0xff]
        %v316 = vld [vmem:[%s169 + $0x368] sm:$0xff]
        %v317 = vld [vmem:[%s169 + $0x370] sm:$0xff]
        %v318 = vld [vmem:[%s169 + $0x378] sm:$0xff]
        %v319 = vld [vmem:[%s169 + $0x380] sm:$0xff]
        %v320 = vld [vmem:[%s169 + $0x388] sm:$0xff]
        %v321 = vld [vmem:[%s169 + $0x390] sm:$0xff]
        %v322 = vld [vmem:[%s169 + $0x398] sm:$0xff]
        %v323 = vld [vmem:[%s169 + $0x3a0] sm:$0xff]
        %v324 = vld [vmem:[%s169 + $0x3a8] sm:$0xff]
        %v325 = vld [vmem:[%s169 + $0x3b0] sm:$0xff]
        %v326 = vld [vmem:[%s169 + $0x3b8] sm:$0xff]
        %v327 = vld [vmem:[%s169 + $0x3c0] sm:$0xff]
        %v328 = vld [vmem:[%s169 + $0x3c8] sm:$0xff]
        %v329 = vld [vmem:[%s169 + $0x3d0] sm:$0xff]
        %v330 = vld [vmem:[%s169 + $0x3d8] sm:$0xff]
        %v331 = vld [vmem:[%s169 + $0x3e0] sm:$0xff]
        %v332 = vld [vmem:[%s169 + $0x3e8] sm:$0xff]
        %v333 = vld [vmem:[%s169 + $0x3f0] sm:$0xff]
        %v334 = vld [vmem:[%s169 + $0x3f8] sm:$0xff]
        %v335 = vld [vmem:[%s178] sm:$0xff]
        %v336 = vld [vmem:[%s178 + $0x8] sm:$0xff]
        %v337 = vld [vmem:[%s178 + $0x10] sm:$0xff]
        %v338 = vld [vmem:[%s178 + $0x18] sm:$0xff]
        %v339 = vld [vmem:[%s178 + $0x20] sm:$0xff]
        %v340 = vld [vmem:[%s178 + $0x28] sm:$0xff]
        %v341 = vld [vmem:[%s178 + $0x30] sm:$0xff]
        %v342 = vld [vmem:[%s178 + $0x38] sm:$0xff]
        %v343 = vld [vmem:[%s178 + $0x40] sm:$0xff]
        %v344 = vld [vmem:[%s178 + $0x48] sm:$0xff]
        %v345 = vld [vmem:[%s178 + $0x50] sm:$0xff]
        %v346 = vld [vmem:[%s178 + $0x58] sm:$0xff]
        %v347 = vld [vmem:[%s178 + $0x60] sm:$0xff]
        %v348 = vld [vmem:[%s178 + $0x68] sm:$0xff]
        %v349 = vld [vmem:[%s178 + $0x70] sm:$0xff]
        %v350 = vld [vmem:[%s178 + $0x78] sm:$0xff]
        %v351 = vld [vmem:[%s178 + $0x80] sm:$0xff]
        %v352 = vld [vmem:[%s178 + $0x88] sm:$0xff]
        %v353 = vld [vmem:[%s178 + $0x90] sm:$0xff]
        %v354 = vld [vmem:[%s178 + $0x98] sm:$0xff]
        %v355 = vld [vmem:[%s178 + $0xa0] sm:$0xff]
        %v356 = vld [vmem:[%s178 + $0xa8] sm:$0xff]
        %v357 = vld [vmem:[%s178 + $0xb0] sm:$0xff]
        %v358 = vld [vmem:[%s178 + $0xb8] sm:$0xff]
        %v359 = vld [vmem:[%s178 + $0xc0] sm:$0xff]
        %v360 = vld [vmem:[%s178 + $0xc8] sm:$0xff]
        %v361 = vld [vmem:[%s178 + $0xd0] sm:$0xff]
        %v362 = vld [vmem:[%s178 + $0xd8] sm:$0xff]
        %v363 = vld [vmem:[%s178 + $0xe0] sm:$0xff]
        %v364 = vld [vmem:[%s178 + $0xe8] sm:$0xff]
        %v365 = vld [vmem:[%s178 + $0xf0] sm:$0xff]
        %v366 = vld [vmem:[%s178 + $0xf8] sm:$0xff]
        %v367 = vld [vmem:[%s178 + $0x100] sm:$0xff]
        %v368 = vld [vmem:[%s178 + $0x108] sm:$0xff]
        %v369 = vld [vmem:[%s178 + $0x110] sm:$0xff]
        %v370 = vld [vmem:[%s178 + $0x118] sm:$0xff]
        %v371 = vld [vmem:[%s178 + $0x120] sm:$0xff]
        %v372 = vld [vmem:[%s178 + $0x128] sm:$0xff]
        %v373 = vld [vmem:[%s178 + $0x130] sm:$0xff]
        %v374 = vld [vmem:[%s178 + $0x138] sm:$0xff]
        %v375 = vld [vmem:[%s178 + $0x140] sm:$0xff]
        %v376 = vld [vmem:[%s178 + $0x148] sm:$0xff]
        %v377 = vld [vmem:[%s178 + $0x150] sm:$0xff]
        %v378 = vld [vmem:[%s178 + $0x158] sm:$0xff]
        %v379 = vld [vmem:[%s178 + $0x160] sm:$0xff]
        %v380 = vld [vmem:[%s178 + $0x168] sm:$0xff]
        %v381 = vld [vmem:[%s178 + $0x170] sm:$0xff]
        %v382 = vld [vmem:[%s178 + $0x178] sm:$0xff]
        %v383 = vld [vmem:[%s178 + $0x180] sm:$0xff]
        %v384 = vld [vmem:[%s178 + $0x188] sm:$0xff]
        %v385 = vld [vmem:[%s178 + $0x190] sm:$0xff]
        %v386 = vld [vmem:[%s178 + $0x198] sm:$0xff]
        %v387 = vld [vmem:[%s178 + $0x1a0] sm:$0xff]
        %v388 = vld [vmem:[%s178 + $0x1a8] sm:$0xff]
        %v389 = vld [vmem:[%s178 + $0x1b0] sm:$0xff]
        %v390 = vld [vmem:[%s178 + $0x1b8] sm:$0xff]
        %v391 = vld [vmem:[%s178 + $0x1c0] sm:$0xff]
        %v392 = vld [vmem:[%s178 + $0x1c8] sm:$0xff]
        %v393 = vld [vmem:[%s178 + $0x1d0] sm:$0xff]
        %v394 = vld [vmem:[%s178 + $0x1d8] sm:$0xff]
        %v395 = vld [vmem:[%s178 + $0x1e0] sm:$0xff]
        %v396 = vld [vmem:[%s178 + $0x1e8] sm:$0xff]
        %v397 = vld [vmem:[%s178 + $0x1f0] sm:$0xff]
        %v398 = vld [vmem:[%s178 + $0x1f8] sm:$0xff]
        %v399 = vld [vmem:[%s178 + $0x200] sm:$0xff]
        %v400 = vld [vmem:[%s178 + $0x208] sm:$0xff]
        %v401 = vld [vmem:[%s178 + $0x210] sm:$0xff]
        %v402 = vld [vmem:[%s178 + $0x218] sm:$0xff]
        %v403 = vld [vmem:[%s178 + $0x220] sm:$0xff]
        %v404 = vld [vmem:[%s178 + $0x228] sm:$0xff]
        %v405 = vld [vmem:[%s178 + $0x230] sm:$0xff]
        %v406 = vld [vmem:[%s178 + $0x238] sm:$0xff]
        %v407 = vld [vmem:[%s178 + $0x240] sm:$0xff]
        %v408 = vld [vmem:[%s178 + $0x248] sm:$0xff]
        %v409 = vld [vmem:[%s178 + $0x250] sm:$0xff]
        %v410 = vld [vmem:[%s178 + $0x258] sm:$0xff]
        %v411 = vld [vmem:[%s178 + $0x260] sm:$0xff]
        %v412 = vld [vmem:[%s178 + $0x268] sm:$0xff]
        %v413 = vld [vmem:[%s178 + $0x270] sm:$0xff]
        %v414 = vld [vmem:[%s178 + $0x278] sm:$0xff]
        %v415 = vld [vmem:[%s178 + $0x280] sm:$0xff]
        %v416 = vld [vmem:[%s178 + $0x288] sm:$0xff]
        %v417 = vld [vmem:[%s178 + $0x290] sm:$0xff]
        %v418 = vld [vmem:[%s178 + $0x298] sm:$0xff]
        %v419 = vld [vmem:[%s178 + $0x2a0] sm:$0xff]
        %v420 = vld [vmem:[%s178 + $0x2a8] sm:$0xff]
        %v421 = vld [vmem:[%s178 + $0x2b0] sm:$0xff]
        %v422 = vld [vmem:[%s178 + $0x2b8] sm:$0xff]
        %v423 = vld [vmem:[%s178 + $0x2c0] sm:$0xff]
        %v424 = vld [vmem:[%s178 + $0x2c8] sm:$0xff]
        %v425 = vld [vmem:[%s178 + $0x2d0] sm:$0xff]
        %v426 = vld [vmem:[%s178 + $0x2d8] sm:$0xff]
        %v427 = vld [vmem:[%s178 + $0x2e0] sm:$0xff]
        %v428 = vld [vmem:[%s178 + $0x2e8] sm:$0xff]
        %v429 = vld [vmem:[%s178 + $0x2f0] sm:$0xff]
        %v430 = vld [vmem:[%s178 + $0x2f8] sm:$0xff]
        %v431 = vld [vmem:[%s178 + $0x300] sm:$0xff]
        %v432 = vld [vmem:[%s178 + $0x308] sm:$0xff]
        %v433 = vld [vmem:[%s178 + $0x310] sm:$0xff]
        %v434 = vld [vmem:[%s178 + $0x318] sm:$0xff]
        %v435 = vld [vmem:[%s178 + $0x320] sm:$0xff]
        %v436 = vld [vmem:[%s178 + $0x328] sm:$0xff]
        %v437 = vld [vmem:[%s178 + $0x330] sm:$0xff]
        %v438 = vld [vmem:[%s178 + $0x338] sm:$0xff]
        %v439 = vld [vmem:[%s178 + $0x340] sm:$0xff]
        %v440 = vld [vmem:[%s178 + $0x348] sm:$0xff]
        %v441 = vld [vmem:[%s178 + $0x350] sm:$0xff]
        %v442 = vld [vmem:[%s178 + $0x358] sm:$0xff]
        %v443 = vld [vmem:[%s178 + $0x360] sm:$0xff]
        %v444 = vld [vmem:[%s178 + $0x368] sm:$0xff]
        %v445 = vld [vmem:[%s178 + $0x370] sm:$0xff]
        %v446 = vld [vmem:[%s178 + $0x378] sm:$0xff]
        %v447 = vld [vmem:[%s178 + $0x380] sm:$0xff]
        %v448 = vld [vmem:[%s178 + $0x388] sm:$0xff]
        %v449 = vld [vmem:[%s178 + $0x390] sm:$0xff]
        %v450 = vld [vmem:[%s178 + $0x398] sm:$0xff]
        %v451 = vld [vmem:[%s178 + $0x3a0] sm:$0xff]
        %v452 = vld [vmem:[%s178 + $0x3a8] sm:$0xff]
        %v453 = vld [vmem:[%s178 + $0x3b0] sm:$0xff]
        %v454 = vld [vmem:[%s178 + $0x3b8] sm:$0xff]
        %v455 = vld [vmem:[%s178 + $0x3c0] sm:$0xff]
        %v456 = vld [vmem:[%s178 + $0x3c8] sm:$0xff]
        %v457 = vld [vmem:[%s178 + $0x3d0] sm:$0xff]
        %v458 = vld [vmem:[%s178 + $0x3d8] sm:$0xff]
        %v459 = vld [vmem:[%s178 + $0x3e0] sm:$0xff]
        %v460 = vld [vmem:[%s178 + $0x3e8] sm:$0xff]
        %v461 = vld [vmem:[%s178 + $0x3f0] sm:$0xff]
        %v462 = vld [vmem:[%s178 + $0x3f8] sm:$0xff]
        %v463 = vmul.f32 %v335, 0.1
        %v464 = vmul.f32 %v336, 0.1
        %v465 = vmul.f32 %v337, 0.1
        %v466 = vmul.f32 %v338, 0.1
        %v467 = vmul.f32 %v339, 0.1
        %v468 = vmul.f32 %v340, 0.1
        %v469 = vmul.f32 %v341, 0.1
        %v470 = vmul.f32 %v342, 0.1
        %v471 = vmul.f32 %v343, 0.1
        %v472 = vmul.f32 %v344, 0.1
        %v473 = vmul.f32 %v345, 0.1
        %v474 = vmul.f32 %v346, 0.1
        %v475 = vmul.f32 %v347, 0.1
        %v476 = vmul.f32 %v348, 0.1
        %v477 = vmul.f32 %v349, 0.1
        %v478 = vmul.f32 %v350, 0.1
        %v479 = vmul.f32 %v351, 0.1
        %v480 = vmul.f32 %v352, 0.1
        %v481 = vmul.f32 %v353, 0.1
        %v482 = vmul.f32 %v354, 0.1
        %v483 = vmul.f32 %v355, 0.1
        %v484 = vmul.f32 %v356, 0.1
        %v485 = vmul.f32 %v357, 0.1
        %v486 = vmul.f32 %v358, 0.1
        %v487 = vmul.f32 %v359, 0.1
        %v488 = vmul.f32 %v360, 0.1
        %v489 = vmul.f32 %v361, 0.1
        %v490 = vmul.f32 %v362, 0.1
        %v491 = vmul.f32 %v363, 0.1
        %v492 = vmul.f32 %v364, 0.1
        %v493 = vmul.f32 %v365, 0.1
        %v494 = vmul.f32 %v366, 0.1
        %v495 = vmul.f32 %v367, 0.1
        %v496 = vmul.f32 %v368, 0.1
        %v497 = vmul.f32 %v369, 0.1
        %v498 = vmul.f32 %v370, 0.1
        %v499 = vmul.f32 %v371, 0.1
        %v500 = vmul.f32 %v372, 0.1
        %v501 = vmul.f32 %v373, 0.1
        %v502 = vmul.f32 %v374, 0.1
        %v503 = vmul.f32 %v375, 0.1
        %v504 = vmul.f32 %v376, 0.1
        %v505 = vmul.f32 %v377, 0.1
        %v506 = vmul.f32 %v378, 0.1
        %v507 = vmul.f32 %v379, 0.1
        %v508 = vmul.f32 %v380, 0.1
        %v509 = vmul.f32 %v381, 0.1
        %v510 = vmul.f32 %v382, 0.1
        %v511 = vmul.f32 %v383, 0.1
        %v512 = vmul.f32 %v384, 0.1
        %v513 = vmul.f32 %v385, 0.1
        %v514 = vmul.f32 %v386, 0.1
        %v515 = vmul.f32 %v387, 0.1
        %v516 = vmul.f32 %v388, 0.1
        %v517 = vmul.f32 %v389, 0.1
        %v518 = vmul.f32 %v390, 0.1
        %v519 = vmul.f32 %v391, 0.1
        %v520 = vmul.f32 %v392, 0.1
        %v521 = vmul.f32 %v393, 0.1
        %v522 = vmul.f32 %v394, 0.1
        %v523 = vmul.f32 %v395, 0.1
        %v524 = vmul.f32 %v396, 0.1
        %v525 = vmul.f32 %v397, 0.1
        %v526 = vmul.f32 %v398, 0.1
        %v527 = vmul.f32 %v399, 0.1
        %v528 = vmul.f32 %v400, 0.1
        %v529 = vmul.f32 %v401, 0.1
        %v530 = vmul.f32 %v402, 0.1
        %v531 = vmul.f32 %v403, 0.1
        %v532 = vmul.f32 %v404, 0.1
        %v533 = vmul.f32 %v405, 0.1
        %v534 = vmul.f32 %v406, 0.1
        %v535 = vmul.f32 %v407, 0.1
        %v536 = vmul.f32 %v408, 0.1
        %v537 = vmul.f32 %v409, 0.1
        %v538 = vmul.f32 %v410, 0.1
        %v539 = vmul.f32 %v411, 0.1
        %v540 = vmul.f32 %v412, 0.1
        %v541 = vmul.f32 %v413, 0.1
        %v542 = vmul.f32 %v414, 0.1
        %v543 = vmul.f32 %v415, 0.1
        %v544 = vmul.f32 %v416, 0.1
        %v545 = vmul.f32 %v417, 0.1
        %v546 = vmul.f32 %v418, 0.1
        %v547 = vmul.f32 %v419, 0.1
        %v548 = vmul.f32 %v420, 0.1
        %v549 = vmul.f32 %v421, 0.1
        %v550 = vmul.f32 %v422, 0.1
        %v551 = vmul.f32 %v423, 0.1
        %v552 = vmul.f32 %v424, 0.1
        %v553 = vmul.f32 %v425, 0.1
        %v554 = vmul.f32 %v426, 0.1
        %v555 = vmul.f32 %v427, 0.1
        %v556 = vmul.f32 %v428, 0.1
        %v557 = vmul.f32 %v429, 0.1
        %v558 = vmul.f32 %v430, 0.1
        %v559 = vmul.f32 %v431, 0.1
        %v560 = vmul.f32 %v432, 0.1
        %v561 = vmul.f32 %v433, 0.1
        %v562 = vmul.f32 %v434, 0.1
        %v563 = vmul.f32 %v435, 0.1
        %v564 = vmul.f32 %v436, 0.1
        %v565 = vmul.f32 %v437, 0.1
        %v566 = vmul.f32 %v438, 0.1
        %v567 = vmul.f32 %v439, 0.1
        %v568 = vmul.f32 %v440, 0.1
        %v569 = vmul.f32 %v441, 0.1
        %v570 = vmul.f32 %v442, 0.1
        %v571 = vmul.f32 %v443, 0.1
        %v572 = vmul.f32 %v444, 0.1
        %v573 = vmul.f32 %v445, 0.1
        %v574 = vmul.f32 %v446, 0.1
        %v575 = vmul.f32 %v447, 0.1
        %v576 = vmul.f32 %v448, 0.1
        %v577 = vmul.f32 %v449, 0.1
        %v578 = vmul.f32 %v450, 0.1
        %v579 = vmul.f32 %v451, 0.1
        %v580 = vmul.f32 %v452, 0.1
        %v581 = vmul.f32 %v453, 0.1
        %v582 = vmul.f32 %v454, 0.1
        %v583 = vmul.f32 %v455, 0.1
        %v584 = vmul.f32 %v456, 0.1
        %v585 = vmul.f32 %v457, 0.1
        %v586 = vmul.f32 %v458, 0.1
        %v587 = vmul.f32 %v459, 0.1
        %v588 = vmul.f32 %v460, 0.1
        %v589 = vmul.f32 %v461, 0.1
        %v590 = vmul.f32 %v462, 0.1
        %v591 = vsub.f32 %v207, %v463
        %v592 = vsub.f32 %v208, %v464
        %v593 = vsub.f32 %v209, %v465
        %v594 = vsub.f32 %v210, %v466
        %v595 = vsub.f32 %v211, %v467
        %v596 = vsub.f32 %v212, %v468
        %v597 = vsub.f32 %v213, %v469
        %v598 = vsub.f32 %v214, %v470
        %v599 = vsub.f32 %v215, %v471
        %v600 = vsub.f32 %v216, %v472
        %v601 = vsub.f32 %v217, %v473
        %v602 = vsub.f32 %v218, %v474
        %v603 = vsub.f32 %v219, %v475
        %v604 = vsub.f32 %v220, %v476
        %v605 = vsub.f32 %v221, %v477
        %v606 = vsub.f32 %v222, %v478
        %v607 = vsub.f32 %v223, %v479
        %v608 = vsub.f32 %v224, %v480
        %v609 = vsub.f32 %v225, %v481
        %v610 = vsub.f32 %v226, %v482
        %v611 = vsub.f32 %v227, %v483
        %v612 = vsub.f32 %v228, %v484
        %v613 = vsub.f32 %v229, %v485
        %v614 = vsub.f32 %v230, %v486
        %v615 = vsub.f32 %v231, %v487
        %v616 = vsub.f32 %v232, %v488
        %v617 = vsub.f32 %v233, %v489
        %v618 = vsub.f32 %v234, %v490
        %v619 = vsub.f32 %v235, %v491
        %v620 = vsub.f32 %v236, %v492
        %v621 = vsub.f32 %v237, %v493
        %v622 = vsub.f32 %v238, %v494
        %v623 = vsub.f32 %v239, %v495
        %v624 = vsub.f32 %v240, %v496
        %v625 = vsub.f32 %v241, %v497
        %v626 = vsub.f32 %v242, %v498
        %v627 = vsub.f32 %v243, %v499
        %v628 = vsub.f32 %v244, %v500
        %v629 = vsub.f32 %v245, %v501
        %v630 = vsub.f32 %v246, %v502
        %v631 = vsub.f32 %v247, %v503
        %v632 = vsub.f32 %v248, %v504
        %v633 = vsub.f32 %v249, %v505
        %v634 = vsub.f32 %v250, %v506
        %v635 = vsub.f32 %v251, %v507
        %v636 = vsub.f32 %v252, %v508
        %v637 = vsub.f32 %v253, %v509
        %v638 = vsub.f32 %v254, %v510
        %v639 = vsub.f32 %v255, %v511
        %v640 = vsub.f32 %v256, %v512
        %v641 = vsub.f32 %v257, %v513
        %v642 = vsub.f32 %v258, %v514
        %v643 = vsub.f32 %v259, %v515
        %v644 = vsub.f32 %v260, %v516
        %v645 = vsub.f32 %v261, %v517
        %v646 = vsub.f32 %v262, %v518
        %v647 = vsub.f32 %v263, %v519
        %v648 = vsub.f32 %v264, %v520
        %v649 = vsub.f32 %v265, %v521
        %v650 = vsub.f32 %v266, %v522
        %v651 = vsub.f32 %v267, %v523
        %v652 = vsub.f32 %v268, %v524
        %v653 = vsub.f32 %v269, %v525
        %v654 = vsub.f32 %v270, %v526
        %v655 = vsub.f32 %v271, %v527
        %v656 = vsub.f32 %v272, %v528
        %v657 = vsub.f32 %v273, %v529
        %v658 = vsub.f32 %v274, %v530
        %v659 = vsub.f32 %v275, %v531
        %v660 = vsub.f32 %v276, %v532
        %v661 = vsub.f32 %v277, %v533
        %v662 = vsub.f32 %v278, %v534
        %v663 = vsub.f32 %v279, %v535
        %v664 = vsub.f32 %v280, %v536
        %v665 = vsub.f32 %v281, %v537
        %v666 = vsub.f32 %v282, %v538
        %v667 = vsub.f32 %v283, %v539
        %v668 = vsub.f32 %v284, %v540
        %v669 = vsub.f32 %v285, %v541
        %v670 = vsub.f32 %v286, %v542
        %v671 = vsub.f32 %v287, %v543
        %v672 = vsub.f32 %v288, %v544
        %v673 = vsub.f32 %v289, %v545
        %v674 = vsub.f32 %v290, %v546
        %v675 = vsub.f32 %v291, %v547
        %v676 = vsub.f32 %v292, %v548
        %v677 = vsub.f32 %v293, %v549
        %v678 = vsub.f32 %v294, %v550
        %v679 = vsub.f32 %v295, %v551
        %v680 = vsub.f32 %v296, %v552
        %v681 = vsub.f32 %v297, %v553
        %v682 = vsub.f32 %v298, %v554
        %v683 = vsub.f32 %v299, %v555
        %v684 = vsub.f32 %v300, %v556
        %v685 = vsub.f32 %v301, %v557
        %v686 = vsub.f32 %v302, %v558
        %v687 = vsub.f32 %v303, %v559
        %v688 = vsub.f32 %v304, %v560
        %v689 = vsub.f32 %v305, %v561
        %v690 = vsub.f32 %v306, %v562
        %v691 = vsub.f32 %v307, %v563
        %v692 = vsub.f32 %v308, %v564
        %v693 = vsub.f32 %v309, %v565
        %v694 = vsub.f32 %v310, %v566
        %v695 = vsub.f32 %v311, %v567
        %v696 = vsub.f32 %v312, %v568
        %v697 = vsub.f32 %v313, %v569
        %v698 = vsub.f32 %v314, %v570
        %v699 = vsub.f32 %v315, %v571
        %v700 = vsub.f32 %v316, %v572
        %v701 = vsub.f32 %v317, %v573
        %v702 = vsub.f32 %v318, %v574
        %v703 = vsub.f32 %v319, %v575
        %v704 = vsub.f32 %v320, %v576
        %v705 = vsub.f32 %v321, %v577
        %v706 = vsub.f32 %v322, %v578
        %v707 = vsub.f32 %v323, %v579
        %v708 = vsub.f32 %v324, %v580
        %v709 = vsub.f32 %v325, %v581
        %v710 = vsub.f32 %v326, %v582
        %v711 = vsub.f32 %v327, %v583
        %v712 = vsub.f32 %v328, %v584
        %v713 = vsub.f32 %v329, %v585
        %v714 = vsub.f32 %v330, %v586
        %v715 = vsub.f32 %v331, %v587
        %v716 = vsub.f32 %v332, %v588
        %v717 = vsub.f32 %v333, %v589
        %v718 = vsub.f32 %v334, %v590
        %v719 = vmul.f32 %v591, %v591
        %v720 = vmul.f32 %v592, %v592
        %v721 = vmul.f32 %v593, %v593
        %v722 = vmul.f32 %v594, %v594
        %v723 = vmul.f32 %v595, %v595
        %v724 = vmul.f32 %v596, %v596
        %v725 = vmul.f32 %v597, %v597
        %v726 = vmul.f32 %v598, %v598
        %v727 = vmul.f32 %v599, %v599
        %v728 = vmul.f32 %v600, %v600
        %v729 = vmul.f32 %v601, %v601
        %v730 = vmul.f32 %v602, %v602
        %v731 = vmul.f32 %v603, %v603
        %v732 = vmul.f32 %v604, %v604
        %v733 = vmul.f32 %v605, %v605
        %v734 = vmul.f32 %v606, %v606
        %v735 = vmul.f32 %v607, %v607
        %v736 = vmul.f32 %v608, %v608
        %v737 = vmul.f32 %v609, %v609
        %v738 = vmul.f32 %v610, %v610
        %v739 = vmul.f32 %v611, %v611
        %v740 = vmul.f32 %v612, %v612
        %v741 = vmul.f32 %v613, %v613
        %v742 = vmul.f32 %v614, %v614
        %v743 = vmul.f32 %v615, %v615
        %v744 = vmul.f32 %v616, %v616
        %v745 = vmul.f32 %v617, %v617
        %v746 = vmul.f32 %v618, %v618
        %v747 = vmul.f32 %v619, %v619
        %v748 = vmul.f32 %v620, %v620
        %v749 = vmul.f32 %v621, %v621
        %v750 = vmul.f32 %v622, %v622
        %v751 = vmul.f32 %v623, %v623
        %v752 = vmul.f32 %v624, %v624
        %v753 = vmul.f32 %v625, %v625
        %v754 = vmul.f32 %v626, %v626
        %v755 = vmul.f32 %v627, %v627
        %v756 = vmul.f32 %v628, %v628
        %v757 = vmul.f32 %v629, %v629
        %v758 = vmul.f32 %v630, %v630
        %v759 = vmul.f32 %v631, %v631
        %v760 = vmul.f32 %v632, %v632
        %v761 = vmul.f32 %v633, %v633
        %v762 = vmul.f32 %v634, %v634
        %v763 = vmul.f32 %v635, %v635
        %v764 = vmul.f32 %v636, %v636
        %v765 = vmul.f32 %v637, %v637
        %v766 = vmul.f32 %v638, %v638
        %v767 = vmul.f32 %v639, %v639
        %v768 = vmul.f32 %v640, %v640
        %v769 = vmul.f32 %v641, %v641
        %v770 = vmul.f32 %v642, %v642
        %v771 = vmul.f32 %v643, %v643
        %v772 = vmul.f32 %v644, %v644
        %v773 = vmul.f32 %v645, %v645
        %v774 = vmul.f32 %v646, %v646
        %v775 = vmul.f32 %v647, %v647
        %v776 = vmul.f32 %v648, %v648
        %v777 = vmul.f32 %v649, %v649
        %v778 = vmul.f32 %v650, %v650
        %v779 = vmul.f32 %v651, %v651
        %v780 = vmul.f32 %v652, %v652
        %v781 = vmul.f32 %v653, %v653
        %v782 = vmul.f32 %v654, %v654
        %v783 = vmul.f32 %v655, %v655
        %v784 = vmul.f32 %v656, %v656
        %v785 = vmul.f32 %v657, %v657
        %v786 = vmul.f32 %v658, %v658
        %v787 = vmul.f32 %v659, %v659
        %v788 = vmul.f32 %v660, %v660
        %v789 = vmul.f32 %v661, %v661
        %v790 = vmul.f32 %v662, %v662
        %v791 = vmul.f32 %v663, %v663
        %v792 = vmul.f32 %v664, %v664
        %v793 = vmul.f32 %v665, %v665
        %v794 = vmul.f32 %v666, %v666
        %v795 = vmul.f32 %v667, %v667
        %v796 = vmul.f32 %v668, %v668
        %v797 = vmul.f32 %v669, %v669
        %v798 = vmul.f32 %v670, %v670
        %v799 = vmul.f32 %v671, %v671
        %v800 = vmul.f32 %v672, %v672
        %v801 = vmul.f32 %v673, %v673
        %v802 = vmul.f32 %v674, %v674
        %v803 = vmul.f32 %v675, %v675
        %v804 = vmul.f32 %v676, %v676
        %v805 = vmul.f32 %v677, %v677
        %v806 = vmul.f32 %v678, %v678
        %v807 = vmul.f32 %v679, %v679
        %v808 = vmul.f32 %v680, %v680
        %v809 = vmul.f32 %v681, %v681
        %v810 = vmul.f32 %v682, %v682
        %v811 = vmul.f32 %v683, %v683
        %v812 = vmul.f32 %v684, %v684
        %v813 = vmul.f32 %v685, %v685
        %v814 = vmul.f32 %v686, %v686
        %v815 = vmul.f32 %v687, %v687
        %v816 = vmul.f32 %v688, %v688
        %v817 = vmul.f32 %v689, %v689
        %v818 = vmul.f32 %v690, %v690
        %v819 = vmul.f32 %v691, %v691
        %v820 = vmul.f32 %v692, %v692
        %v821 = vmul.f32 %v693, %v693
        %v822 = vmul.f32 %v694, %v694
        %v823 = vmul.f32 %v695, %v695
        %v824 = vmul.f32 %v696, %v696
        %v825 = vmul.f32 %v697, %v697
        %v826 = vmul.f32 %v698, %v698
        %v827 = vmul.f32 %v699, %v699
        %v828 = vmul.f32 %v700, %v700
        %v829 = vmul.f32 %v701, %v701
        %v830 = vmul.f32 %v702, %v702
        %v831 = vmul.f32 %v703, %v703
        %v832 = vmul.f32 %v704, %v704
        %v833 = vmul.f32 %v705, %v705
        %v834 = vmul.f32 %v706, %v706
        %v835 = vmul.f32 %v707, %v707
        %v836 = vmul.f32 %v708, %v708
        %v837 = vmul.f32 %v709, %v709
        %v838 = vmul.f32 %v710, %v710
        %v839 = vmul.f32 %v711, %v711
        %v840 = vmul.f32 %v712, %v712
        %v841 = vmul.f32 %v713, %v713
        %v842 = vmul.f32 %v714, %v714
        %v843 = vmul.f32 %v715, %v715
        %v844 = vmul.f32 %v716, %v716
        %v845 = vmul.f32 %v717, %v717
        %v846 = vmul.f32 %v718, %v718
        %847 = vst [vmem:[%s203] sm:$0xff] %v719
        %848 = vst [vmem:[%s203 + $0x8] sm:$0xff] %v720
        %849 = vst [vmem:[%s203 + $0x10] sm:$0xff] %v721
        %850 = vst [vmem:[%s203 + $0x18] sm:$0xff] %v722
        %851 = vst [vmem:[%s203 + $0x20] sm:$0xff] %v723
        %852 = vst [vmem:[%s203 + $0x28] sm:$0xff] %v724
        %853 = vst [vmem:[%s203 + $0x30] sm:$0xff] %v725
        %854 = vst [vmem:[%s203 + $0x38] sm:$0xff] %v726
        %855 = vst [vmem:[%s203 + $0x40] sm:$0xff] %v727
        %856 = vst [vmem:[%s203 + $0x48] sm:$0xff] %v728
        %857 = vst [vmem:[%s203 + $0x50] sm:$0xff] %v729
        %858 = vst [vmem:[%s203 + $0x58] sm:$0xff] %v730
        %859 = vst [vmem:[%s203 + $0x60] sm:$0xff] %v731
        %860 = vst [vmem:[%s203 + $0x68] sm:$0xff] %v732
        %861 = vst [vmem:[%s203 + $0x70] sm:$0xff] %v733
        %862 = vst [vmem:[%s203 + $0x78] sm:$0xff] %v734
        %863 = vst [vmem:[%s203 + $0x80] sm:$0xff] %v735
        %864 = vst [vmem:[%s203 + $0x88] sm:$0xff] %v736
        %865 = vst [vmem:[%s203 + $0x90] sm:$0xff] %v737
        %866 = vst [vmem:[%s203 + $0x98] sm:$0xff] %v738
        %867 = vst [vmem:[%s203 + $0xa0] sm:$0xff] %v739
        %868 = vst [vmem:[%s203 + $0xa8] sm:$0xff] %v740
        %869 = vst [vmem:[%s203 + $0xb0] sm:$0xff] %v741
        %870 = vst [vmem:[%s203 + $0xb8] sm:$0xff] %v742
        %871 = vst [vmem:[%s203 + $0xc0] sm:$0xff] %v743
        %872 = vst [vmem:[%s203 + $0xc8] sm:$0xff] %v744
        %873 = vst [vmem:[%s203 + $0xd0] sm:$0xff] %v745
        %874 = vst [vmem:[%s203 + $0xd8] sm:$0xff] %v746
        %875 = vst [vmem:[%s203 + $0xe0] sm:$0xff] %v747
        %876 = vst [vmem:[%s203 + $0xe8] sm:$0xff] %v748
        %877 = vst [vmem:[%s203 + $0xf0] sm:$0xff] %v749
        %878 = vst [vmem:[%s203 + $0xf8] sm:$0xff] %v750
        %879 = vst [vmem:[%s203 + $0x100] sm:$0xff] %v751
        %880 = vst [vmem:[%s203 + $0x108] sm:$0xff] %v752
        %881 = vst [vmem:[%s203 + $0x110] sm:$0xff] %v753
        %882 = vst [vmem:[%s203 + $0x118] sm:$0xff] %v754
        %883 = vst [vmem:[%s203 + $0x120] sm:$0xff] %v755
        %884 = vst [vmem:[%s203 + $0x128] sm:$0xff] %v756
        %885 = vst [vmem:[%s203 + $0x130] sm:$0xff] %v757
        %886 = vst [vmem:[%s203 + $0x138] sm:$0xff] %v758
        %887 = vst [vmem:[%s203 + $0x140] sm:$0xff] %v759
        %888 = vst [vmem:[%s203 + $0x148] sm:$0xff] %v760
        %889 = vst [vmem:[%s203 + $0x150] sm:$0xff] %v761
        %890 = vst [vmem:[%s203 + $0x158] sm:$0xff] %v762
        %891 = vst [vmem:[%s203 + $0x160] sm:$0xff] %v763
        %892 = vst [vmem:[%s203 + $0x168] sm:$0xff] %v764
        %893 = vst [vmem:[%s203 + $0x170] sm:$0xff] %v765
        %894 = vst [vmem:[%s203 + $0x178] sm:$0xff] %v766
        %895 = vst [vmem:[%s203 + $0x180] sm:$0xff] %v767
        %896 = vst [vmem:[%s203 + $0x188] sm:$0xff] %v768
        %897 = vst [vmem:[%s203 + $0x190] sm:$0xff] %v769
        %898 = vst [vmem:[%s203 + $0x198] sm:$0xff] %v770
        %899 = vst [vmem:[%s203 + $0x1a0] sm:$0xff] %v771
        %900 = vst [vmem:[%s203 + $0x1a8] sm:$0xff] %v772
        %901 = vst [vmem:[%s203 + $0x1b0] sm:$0xff] %v773
        %902 = vst [vmem:[%s203 + $0x1b8] sm:$0xff] %v774
        %903 = vst [vmem:[%s203 + $0x1c0] sm:$0xff] %v775
        %904 = vst [vmem:[%s203 + $0x1c8] sm:$0xff] %v776
        %905 = vst [vmem:[%s203 + $0x1d0] sm:$0xff] %v777
        %906 = vst [vmem:[%s203 + $0x1d8] sm:$0xff] %v778
        %907 = vst [vmem:[%s203 + $0x1e0] sm:$0xff] %v779
        %908 = vst [vmem:[%s203 + $0x1e8] sm:$0xff] %v780
        %909 = vst [vmem:[%s203 + $0x1f0] sm:$0xff] %v781
        %910 = vst [vmem:[%s203 + $0x1f8] sm:$0xff] %v782
        %911 = vst [vmem:[%s203 + $0x200] sm:$0xff] %v783
        %912 = vst [vmem:[%s203 + $0x208] sm:$0xff] %v784
        %913 = vst [vmem:[%s203 + $0x210] sm:$0xff] %v785
        %914 = vst [vmem:[%s203 + $0x218] sm:$0xff] %v786
        %915 = vst [vmem:[%s203 + $0x220] sm:$0xff] %v787
        %916 = vst [vmem:[%s203 + $0x228] sm:$0xff] %v788
        %917 = vst [vmem:[%s203 + $0x230] sm:$0xff] %v789
        %918 = vst [vmem:[%s203 + $0x238] sm:$0xff] %v790
        %919 = vst [vmem:[%s203 + $0x240] sm:$0xff] %v791
        %920 = vst [vmem:[%s203 + $0x248] sm:$0xff] %v792
        %921 = vst [vmem:[%s203 + $0x250] sm:$0xff] %v793
        %922 = vst [vmem:[%s203 + $0x258] sm:$0xff] %v794
        %923 = vst [vmem:[%s203 + $0x260] sm:$0xff] %v795
        %924 = vst [vmem:[%s203 + $0x268] sm:$0xff] %v796
        %925 = vst [vmem:[%s203 + $0x270] sm:$0xff] %v797
        %926 = vst [vmem:[%s203 + $0x278] sm:$0xff] %v798
        %927 = vst [vmem:[%s203 + $0x280] sm:$0xff] %v799
        %928 = vst [vmem:[%s203 + $0x288] sm:$0xff] %v800
        %929 = vst [vmem:[%s203 + $0x290] sm:$0xff] %v801
        %930 = vst [vmem:[%s203 + $0x298] sm:$0xff] %v802
        %931 = vst [vmem:[%s203 + $0x2a0] sm:$0xff] %v803
        %932 = vst [vmem:[%s203 + $0x2a8] sm:$0xff] %v804
        %933 = vst [vmem:[%s203 + $0x2b0] sm:$0xff] %v805
        %934 = vst [vmem:[%s203 + $0x2b8] sm:$0xff] %v806
        %935 = vst [vmem:[%s203 + $0x2c0] sm:$0xff] %v807
        %936 = vst [vmem:[%s203 + $0x2c8] sm:$0xff] %v808
        %937 = vst [vmem:[%s203 + $0x2d0] sm:$0xff] %v809
        %938 = vst [vmem:[%s203 + $0x2d8] sm:$0xff] %v810
        %939 = vst [vmem:[%s203 + $0x2e0] sm:$0xff] %v811
        %940 = vst [vmem:[%s203 + $0x2e8] sm:$0xff] %v812
        %941 = vst [vmem:[%s203 + $0x2f0] sm:$0xff] %v813
        %942 = vst [vmem:[%s203 + $0x2f8] sm:$0xff] %v814
        %943 = vst [vmem:[%s203 + $0x300] sm:$0xff] %v815
        %944 = vst [vmem:[%s203 + $0x308] sm:$0xff] %v816
        %945 = vst [vmem:[%s203 + $0x310] sm:$0xff] %v817
        %946 = vst [vmem:[%s203 + $0x318] sm:$0xff] %v818
        %947 = vst [vmem:[%s203 + $0x320] sm:$0xff] %v819
        %948 = vst [vmem:[%s203 + $0x328] sm:$0xff] %v820
        %949 = vst [vmem:[%s203 + $0x330] sm:$0xff] %v821
        %950 = vst [vmem:[%s203 + $0x338] sm:$0xff] %v822
        %951 = vst [vmem:[%s203 + $0x340] sm:$0xff] %v823
        %952 = vst [vmem:[%s203 + $0x348] sm:$0xff] %v824
        %953 = vst [vmem:[%s203 + $0x350] sm:$0xff] %v825
        %954 = vst [vmem:[%s203 + $0x358] sm:$0xff] %v826
        %955 = vst [vmem:[%s203 + $0x360] sm:$0xff] %v827
        %956 = vst [vmem:[%s203 + $0x368] sm:$0xff] %v828
        %957 = vst [vmem:[%s203 + $0x370] sm:$0xff] %v829
        %958 = vst [vmem:[%s203 + $0x378] sm:$0xff] %v830
        %959 = vst [vmem:[%s203 + $0x380] sm:$0xff] %v831
        %960 = vst [vmem:[%s203 + $0x388] sm:$0xff] %v832
        %961 = vst [vmem:[%s203 + $0x390] sm:$0xff] %v833
        %962 = vst [vmem:[%s203 + $0x398] sm:$0xff] %v834
        %963 = vst [vmem:[%s203 + $0x3a0] sm:$0xff] %v835
        %964 = vst [vmem:[%s203 + $0x3a8] sm:$0xff] %v836
        %965 = vst [vmem:[%s203 + $0x3b0] sm:$0xff] %v837
        %966 = vst [vmem:[%s203 + $0x3b8] sm:$0xff] %v838
        %967 = vst [vmem:[%s203 + $0x3c0] sm:$0xff] %v839
        %968 = vst [vmem:[%s203 + $0x3c8] sm:$0xff] %v840
        %969 = vst [vmem:[%s203 + $0x3d0] sm:$0xff] %v841
        %970 = vst [vmem:[%s203 + $0x3d8] sm:$0xff] %v842
        %971 = vst [vmem:[%s203 + $0x3e0] sm:$0xff] %v843
        %972 = vst [vmem:[%s203 + $0x3e8] sm:$0xff] %v844
        %973 = vst [vmem:[%s203 + $0x3f0] sm:$0xff] %v845
        %974 = vst [vmem:[%s203 + $0x3f8] sm:$0xff] %v846
        %s975 = sand.u32 %s82, 1
        %s976 = scalar_lea.sflag [#allocation4], %s975
        %s977 = sand.u32 %s82, 1
        %s978 = smul.addr %s977, 1024
        %s979 = scalar_lea.vmem [#allocation7], %s978
        // Predicated region
        $region37: #{tpu_custom_call.1} parent=27 // pred_check
          %p980 = pneg %p92
        $region38: #{tpu_custom_call.1} parent=27 // pred_check_branch
          %982 = sbr.rel (%p980) target = $region40
        $region39: #{tpu_custom_call.1} parent=27 // pred_region
          %s983 = smul.u32 16, %s22
          %s985 = ssub.s32 16384, 16384
          %986 = vsyncadd %s976, %s985
          %s987 = smul.addr %s983, 8
          %s988 = smul.addr %s987, 128
          %s989 = scalar_lea.hbm %s2, %s988
          %s990 = sshll.u32 %s979, 4
          %s991 = int_to_ptr.vmem [resolvable:$true] %s990
          %996 = dma.vmem_to_hbm [thread:$0]  %s991, 16384, %s989, %s976, 1024, 1024, 64
        $region40: #{tpu_custom_call.1} parent=27 // pred_fallthru
          _
      $region28: #{tpu_custom_call.1} parent=5 // pred_fallthru
        _
      %p997 = scmp.le.s32.totalorder 2, %s17
      // Predicated region
      $region41: #{tpu_custom_call.1} parent=5 // pred_check
        %p998 = pneg %p997
      $region42: #{tpu_custom_call.1} parent=5 // pred_check_branch
        %1000 = sbr.rel (%p998) target = $region44
      $region43: #{tpu_custom_call.1} parent=5 // pred_region
        %s1001 = ssub.s32 %s17, 2
        // Predicated region
        $region45: #{tpu_custom_call.1} parent=43 // pred_check
          %p1002 = pneg %p98
        $region46: #{tpu_custom_call.1} parent=43 // pred_check_branch
          %1004 = sbr.rel (%p1002) target = $region48
        $region47: #{tpu_custom_call.1} parent=43 // pred_region
          %s1005 = sand.u32 %s83, 1
          %s1006 = scalar_lea.sflag [#allocation4], %s1005
          %s1007 = sand.u32 %s83, 1
          %s1008 = smul.addr %s1007, 1024
          %s1009 = scalar_lea.vmem [#allocation7], %s1008
          %1010 = dma.done %s1006, 16384
        $region48: #{tpu_custom_call.1} parent=43 // pred_fallthru
          _
      $region44: #{tpu_custom_call.1} parent=5 // pred_fallthru
        _
    $region6: #{tpu_custom_call.1} parent=1 // loop_footer
      %s21 = sadd.s32 1, %s17
    $region7: #{tpu_custom_call.1} parent=1 // loop_footer_branch
      %16 = sbr.rel target = $region3
    $region8: #{tpu_custom_call.1} parent=1 // loop_exit
      _
    %1011 = vsyncpa [#allocation3], 1
    %s1012 = scalar_lea.sflag [#allocation3], 1
    %1013 = vsyncpa %s1012, 1
    %1014 = vsyncpa [#allocation6], 1
    %s1015 = scalar_lea.sflag [#allocation6], 1
    %1016 = vsyncpa %s1015, 1
    %1017 = vsyncpa [#allocation4], 1
    %s1018 = scalar_lea.sflag [#allocation4], 1
    %1019 = vsyncpa %s1018, 1

</llo_original>
